<compile_context>
chip_gen: v7x
topology: tpu7x:2x2x1
jax: 0.10.0
libtpu: 0.0.40
codegen_flags: <defaults>
</compile_context>

<pallas_src>
import jax
import jax.numpy as jnp
from jax.experimental import pallas as pl
from jax.experimental.pallas import tpu as pltpu

MAIN_WEIGHT = 1.0
SURP_WEIGHT = 0.022
RHO_WEIGHT = 0.01
VQ_WEIGHT = 2.0


def _diff_pruning_loss_kernel(scalars_ref, labels_ref, pred_ref, mask_ref,
                              out_ref, acc_ref):
    # scalars_ref: SMEM f32[3] = [rho, vq_loss, 1/B]
    # labels_ref : VMEM int32[tile_b, 1]
    # pred_ref   : VMEM [tile_b, C]   (native dtype, cast in-kernel)
    # mask_ref   : VMEM [tile_b, N]   (native dtype, cast in-kernel)
    # out_ref    : SMEM f32[1, 1]     (final scalar loss)
    # acc_ref    : SMEM f32[2] scratch = [sum_ce, sum_surp], lives across grid
    step = pl.program_id(0)

    @pl.when(step == 0)
    def _init():
        acc_ref[0] = jnp.float32(0.0)
        acc_ref[1] = jnp.float32(0.0)

    pred = pred_ref[...].astype(jnp.float32)        # [TB, C]
    mask = mask_ref[...].astype(jnp.float32)        # [TB, N]
    labels = labels_ref[...]                        # [TB, 1] int32
    rho = scalars_ref[0]

    # --- main loss: softmax cross-entropy (max-stabilized LSE), no one-hot ---
    row_max = jnp.max(pred, axis=-1, keepdims=True)                      # [TB,1]
    lse = jnp.log(jnp.sum(jnp.exp(pred - row_max), axis=-1,
                          keepdims=True)) + row_max                      # [TB,1]
    col_ids = jax.lax.broadcasted_iota(jnp.int32, pred.shape, 1)         # [TB,C]
    tgt_logit = jnp.sum(jnp.where(col_ids == labels, pred, 0.0),
                        axis=-1, keepdims=True)                          # [TB,1]
    acc_ref[0] += jnp.sum(lse - tgt_logit)

    # --- surplus (keep-ratio) loss -------------------------------------------
    inv_n = jnp.float32(1.0 / mask.shape[1])
    keep_ratio = jnp.sum(mask, axis=-1, keepdims=True) * inv_n           # [TB,1]
    diff = keep_ratio - rho
    acc_ref[1] += jnp.sum(diff * diff)

    @pl.when(step == pl.num_programs(0) - 1)
    def _finalize():
        inv_b = scalars_ref[2]
        main_loss = acc_ref[0] * inv_b
        surp_loss = acc_ref[1] * inv_b
        out_ref[0, 0] = (MAIN_WEIGHT * main_loss
                         + SURP_WEIGHT * surp_loss
                         + RHO_WEIGHT * scalars_ref[0]
                         + VQ_WEIGHT * scalars_ref[1])


def _pick_tile_b(B, C, N, budget_bytes=4 << 20):
    """Largest multiple-of-8 divisor of B whose double-buffered f32 working
    set stays within a conservative per-step VMEM budget (v7x-safe)."""
    best = None
    for cand in range(8, B + 1, 8):
        if B % cand:
            continue
        step_bytes = 2 * 4 * cand * (C + N + 1)   # 2 bufs x f32 x (pred+mask+labels)
        if step_bytes <= budget_bytes:
            best = cand
    return best if best is not None else B        # full-batch block is always legal


def diff_pruning_loss(pred, labels, mask_m, rho, vq_loss, tile_b=None):
    """pred:[B,C] float logits (any float dtype), labels:[B] int, mask_m:[B,N]
    float (any float dtype), rho / vq_loss python floats or 0-d arrays.
    Returns scalar f32 loss."""
    B, C = pred.shape
    _, N = mask_m.shape

    if tile_b is None:
        tile_b = _pick_tile_b(B, C, N)
    assert B % tile_b == 0, (B, tile_b)
    grid = (B // tile_b,)

    labels2d = labels.astype(jnp.int32).reshape(B, 1)
    scalars = jnp.stack([
        jnp.asarray(rho, jnp.float32).reshape(()),
        jnp.asarray(vq_loss, jnp.float32).reshape(()),
        jnp.float32(1.0 / B),
    ])

    out = pl.pallas_call(
        _diff_pruning_loss_kernel,
        out_shape=jax.ShapeDtypeStruct((1, 1), jnp.float32),
        grid=grid,
        in_specs=[
            pl.BlockSpec(memory_space=pltpu.MemorySpace.SMEM),     # scalars [3]
            pl.BlockSpec((tile_b, 1), lambda i: (i, 0)),           # labels [B,1]
            pl.BlockSpec((tile_b, C), lambda i: (i, 0)),           # pred   [B,C]
            pl.BlockSpec((tile_b, N), lambda i: (i, 0)),           # mask   [B,N]
        ],
        out_specs=pl.BlockSpec(memory_space=pltpu.MemorySpace.SMEM),
        scratch_shapes=[pltpu.SMEM((2,), jnp.float32)],
        compiler_params=pltpu.CompilerParams(
            dimension_semantics=("arbitrary",),          # batch axis is a reduction
            vmem_limit_bytes=32 * 1024 * 1024,
        ),
    )(scalars, labels2d, pred, mask_m)
    return out[0, 0]


def _reference(pred, labels, mask_m, rho, vq_loss):
    # Pure-JAX reference of the PyTorch forward.
    logp = jax.nn.log_softmax(pred.astype(jnp.float32), axis=-1)
    main_loss = -jnp.mean(jnp.take_along_axis(logp, labels[:, None], axis=-1))
    keep_ratio = jnp.mean(mask_m.astype(jnp.float32), axis=1)
    surp_loss = jnp.mean((keep_ratio - rho) ** 2)
    return (MAIN_WEIGHT * main_loss + SURP_WEIGHT * surp_loss
            + RHO_WEIGHT * rho + VQ_WEIGHT * vq_loss)
    # TODO(synk): print_mode running-average bookkeeping (host-side .item()
    # accumulation / periodic print) is stateful logging, not translated.


if __name__ == "__main__":
    key = jax.random.PRNGKey(0)
    k1, k2, k3 = jax.random.split(key, 3)

    B, C, N = 16, 32, 16          # batch, num classes, token (mask) length
    pred = jax.random.normal(k1, (B, C), dtype=jnp.float32)
    labels = jax.random.randint(k2, (B,), 0, C, dtype=jnp.int32)
    mask_m = jax.random.uniform(k3, (B, N), dtype=jnp.float32)   # soft keep mask
    rho = 0.5
    vq_loss = 0.123

    # tile_b=8 -> grid=(2,) so the init/accumulate/finalize path is exercised.
    loss = diff_pruning_loss(pred, labels, mask_m, rho, vq_loss, tile_b=8)
    loss = jax.block_until_ready(loss)

    ref = jax.block_until_ready(_reference(pred, labels, mask_m, rho, vq_loss))
    assert jnp.allclose(loss, ref, rtol=1e-5, atol=1e-5), (loss, ref)

    print("KERNEL_OK")
</pallas_src>

<mosaic_0001>
module attributes {stable_mosaic.version = 11 : i64} {
  func.func @_diff_pruning_loss_kernel(%arg0: i32, %arg1: memref<3xf32, #tpu.memory_space<smem>>, %arg2: memref<8x1xi32, #tpu.memory_space<vmem>>, %arg3: memref<8x32xf32, #tpu.memory_space<vmem>>, %arg4: memref<8x16xf32, #tpu.memory_space<vmem>>, %arg5: memref<1x1xf32, #tpu.memory_space<smem>>, %arg6: memref<2xf32, #tpu.memory_space<smem>>) attributes {dimension_semantics = [#tpu.dimension_semantics<arbitrary>], iteration_bounds = array<i64: 2>, scalar_prefetch = 0 : i64, scratch_operands = 1 : i64, tpu.core_type = #tpu.core_type<tc>, window_params = [{transform_indices = @transform_0, window_bounds = array<i64: 3>}, {transform_indices = @transform_1, window_bounds = array<i64: 8, 1>}, {transform_indices = @transform_2, window_bounds = array<i64: 8, 32>}, {transform_indices = @transform_3, window_bounds = array<i64: 8, 16>}, {transform_indices = @transform_4, window_bounds = array<i64: 1, 1>}]} {
    %c0_i32 = arith.constant 0 : i32
    %0 = arith.cmpi eq, %arg0, %c0_i32 : i32
    %1 = arith.extui %0 : i1 to i32
    %c0_i32_0 = arith.constant 0 : i32
    %2 = arith.cmpi ne, %1, %c0_i32_0 : i32
    scf.if %2 {
      %cst_18 = arith.constant 0.000000e+00 : f32
      %c0_19 = arith.constant 0 : index
      %48 = memref.load %arg6[%c0_19] : memref<2xf32, #tpu.memory_space<smem>>
      memref.store %cst_18, %arg6[%c0_19] : memref<2xf32, #tpu.memory_space<smem>>
      %cst_20 = arith.constant 0.000000e+00 : f32
      %c1_21 = arith.constant 1 : index
      %49 = memref.load %arg6[%c1_21] : memref<2xf32, #tpu.memory_space<smem>>
      memref.store %cst_20, %arg6[%c1_21] : memref<2xf32, #tpu.memory_space<smem>>
    } else {
    }
    %c0 = arith.constant 0 : index
    %c0_1 = arith.constant 0 : index
    %3 = vector.load %arg3[%c0, %c0_1] : memref<8x32xf32, #tpu.memory_space<vmem>>, vector<8x32xf32>
    %c0_2 = arith.constant 0 : index
    %c0_3 = arith.constant 0 : index
    %4 = vector.load %arg4[%c0_2, %c0_3] : memref<8x16xf32, #tpu.memory_space<vmem>>, vector<8x16xf32>
    %c0_4 = arith.constant 0 : index
    %c0_5 = arith.constant 0 : index
    %5 = vector.load %arg2[%c0_4, %c0_5] : memref<8x1xi32, #tpu.memory_space<vmem>>, vector<8x1xi32>
    %c0_6 = arith.constant 0 : index
    %6 = memref.load %arg1[%c0_6] : memref<3xf32, #tpu.memory_space<smem>>
    %cst = arith.constant dense<0xFF800000> : vector<8xf32>
    %7 = vector.multi_reduction <maximumf>, %3, %cst [1] : vector<8x32xf32> to vector<8xf32>
    %8 = vector.shape_cast %7 : vector<8xf32> to vector<8x1xf32>
    %9 = vector.broadcast %8 : vector<8x1xf32> to vector<8x32xf32>
    %10 = arith.subf %3, %9 : vector<8x32xf32>
    %11 = math.exp %10 : vector<8x32xf32>
    %cst_7 = arith.constant dense<0.000000e+00> : vector<8xf32>
    %12 = vector.multi_reduction <add>, %11, %cst_7 [1] : vector<8x32xf32> to vector<8xf32>
    %13 = vector.shape_cast %12 : vector<8xf32> to vector<8x1xf32>
    %14 = math.log %13 : vector<8x1xf32>
    %15 = arith.addf %14, %8 : vector<8x1xf32>
    %16 = tpu.iota {dimensions = array<i32: 1>} : vector<8x32xi32>
    %17 = vector.broadcast %5 : vector<8x1xi32> to vector<8x32xi32>
    %18 = arith.cmpi eq, %16, %17 : vector<8x32xi32>
    %cst_8 = arith.constant 0.000000e+00 : f32
    %19 = vector.broadcast %cst_8 : f32 to vector<8x32xf32>
    %20 = arith.select %18, %3, %19 : vector<8x32xi1>, vector<8x32xf32>
    %cst_9 = arith.constant dense<0.000000e+00> : vector<8xf32>
    %21 = vector.multi_reduction <add>, %20, %cst_9 [1] : vector<8x32xf32> to vector<8xf32>
    %22 = vector.shape_cast %21 : vector<8xf32> to vector<8x1xf32>
    %c0_10 = arith.constant 0 : index
    %23 = memref.load %arg6[%c0_10] : memref<2xf32, #tpu.memory_space<smem>>
    %24 = arith.subf %15, %22 : vector<8x1xf32>
    %25 = vector.shape_cast %24 : vector<8x1xf32> to vector<1x8x1xf32>
    %cst_11 = arith.constant dense<0.000000e+00> : vector<1xf32>
    %26 = vector.multi_reduction <add>, %25, %cst_11 [1, 2] : vector<1x8x1xf32> to vector<1xf32>
    %27 = vector.shape_cast %26 : vector<1xf32> to vector<1x1x1xf32>
    %28 = vector.extract %27[0, 0, 0] : f32 from vector<1x1x1xf32>
    %29 = arith.addf %23, %28 : f32
    %c0_12 = arith.constant 0 : index
    %30 = memref.load %arg6[%c0_12] : memref<2xf32, #tpu.memory_space<smem>>
    memref.store %29, %arg6[%c0_12] : memref<2xf32, #tpu.memory_space<smem>>
    %cst_13 = arith.constant dense<0.000000e+00> : vector<8xf32>
    %31 = vector.multi_reduction <add>, %4, %cst_13 [1] : vector<8x16xf32> to vector<8xf32>
    %32 = vector.shape_cast %31 : vector<8xf32> to vector<8x1xf32>
    %cst_14 = arith.constant 6.250000e-02 : f32
    %33 = vector.broadcast %cst_14 : f32 to vector<8x1xf32>
    %34 = arith.mulf %32, %33 : vector<8x1xf32>
    %35 = vector.broadcast %6 : f32 to vector<8x1xf32>
    %36 = arith.subf %34, %35 : vector<8x1xf32>
    %c1 = arith.constant 1 : index
    %37 = memref.load %arg6[%c1] : memref<2xf32, #tpu.memory_space<smem>>
    %38 = arith.mulf %36, %36 : vector<8x1xf32>
    %39 = vector.shape_cast %38 : vector<8x1xf32> to vector<1x8x1xf32>
    %cst_15 = arith.constant dense<0.000000e+00> : vector<1xf32>
    %40 = vector.multi_reduction <add>, %39, %cst_15 [1, 2] : vector<1x8x1xf32> to vector<1xf32>
    %41 = vector.shape_cast %40 : vector<1xf32> to vector<1x1x1xf32>
    %42 = vector.extract %41[0, 0, 0] : f32 from vector<1x1x1xf32>
    %43 = arith.addf %37, %42 : f32
    %c1_16 = arith.constant 1 : index
    %44 = memref.load %arg6[%c1_16] : memref<2xf32, #tpu.memory_space<smem>>
    memref.store %43, %arg6[%c1_16] : memref<2xf32, #tpu.memory_space<smem>>
    %c1_i32 = arith.constant 1 : i32
    %45 = arith.cmpi eq, %arg0, %c1_i32 : i32
    %46 = arith.extui %45 : i1 to i32
    %c0_i32_17 = arith.constant 0 : i32
    %47 = arith.cmpi ne, %46, %c0_i32_17 : i32
    scf.if %47 {
      %c2 = arith.constant 2 : index
      %48 = memref.load %arg1[%c2] : memref<3xf32, #tpu.memory_space<smem>>
      %c0_18 = arith.constant 0 : index
      %49 = memref.load %arg6[%c0_18] : memref<2xf32, #tpu.memory_space<smem>>
      %50 = arith.mulf %49, %48 : f32
      %c1_19 = arith.constant 1 : index
      %51 = memref.load %arg6[%c1_19] : memref<2xf32, #tpu.memory_space<smem>>
      %52 = arith.mulf %51, %48 : f32
      %cst_20 = arith.constant 1.000000e+00 : f32
      %53 = arith.mulf %cst_20, %50 : f32
      %cst_21 = arith.constant 2.200000e-02 : f32
      %54 = arith.mulf %cst_21, %52 : f32
      %55 = arith.addf %53, %54 : f32
      %c0_22 = arith.constant 0 : index
      %56 = memref.load %arg1[%c0_22] : memref<3xf32, #tpu.memory_space<smem>>
      %cst_23 = arith.constant 0.00999999977 : f32
      %57 = arith.mulf %cst_23, %56 : f32
      %58 = arith.addf %55, %57 : f32
      %c1_24 = arith.constant 1 : index
      %59 = memref.load %arg1[%c1_24] : memref<3xf32, #tpu.memory_space<smem>>
      %cst_25 = arith.constant 2.000000e+00 : f32
      %60 = arith.mulf %cst_25, %59 : f32
      %61 = arith.addf %58, %60 : f32
      %c0_26 = arith.constant 0 : index
      %c0_27 = arith.constant 0 : index
      %62 = memref.load %arg5[%c0_26, %c0_27] : memref<1x1xf32, #tpu.memory_space<smem>>
      memref.store %61, %arg5[%c0_26, %c0_27] : memref<1x1xf32, #tpu.memory_space<smem>>
    } else {
    }
    return
  }
  func.func @transform_0(%arg0: i32) -> i32 {
    %c0_i32 = arith.constant 0 : i32
    %c0_i32_0 = arith.constant 0 : i32
    return %c0_i32 : i32
  }
  func.func @transform_1(%arg0: i32) -> (i32, i32) {
    %c0_i32 = arith.constant 0 : i32
    %c0_i32_0 = arith.constant 0 : i32
    return %arg0, %c0_i32 : i32, i32
  }
  func.func @transform_2(%arg0: i32) -> (i32, i32) {
    %c0_i32 = arith.constant 0 : i32
    %c0_i32_0 = arith.constant 0 : i32
    return %arg0, %c0_i32 : i32, i32
  }
  func.func @transform_3(%arg0: i32) -> (i32, i32) {
    %c0_i32 = arith.constant 0 : i32
    %c0_i32_0 = arith.constant 0 : i32
    return %arg0, %c0_i32 : i32, i32
  }
  func.func @transform_4(%arg0: i32) -> (i32, i32) {
    %c0_i32 = arith.constant 0 : i32
    %c0_i32_0 = arith.constant 0 : i32
    %c0_i32_1 = arith.constant 0 : i32
    return %c0_i32, %c0_i32_0 : i32, i32
  }
}

</mosaic_0001>

<llo_original>
// kernel: tpu_custom_call.1
$region0: #{tpu_custom_call.1}
  #allocation0 [shape = 'u32[]', space=smem, size = 0x4, offset = 0x4, fixed_abs, tag = 'smem constant byte address 0x4 - core index']
  #allocation1 [shape = 'u32[144,128]{1,0:T(1,128)}', space=vmem, size = 0x12000, scoped, tag = 'internal scratch']
  #allocation2 [shape = 'f32[2]{0:T(128)}', space=smem, size = 0x200, scoped, tag = 'scratch operand']
  %s0 = inlined_call_operand.vmem [shape: f32[3], index: 0, kind: input, shape index: {}]
  %s1 = inlined_call_operand.vmem [shape: s32[16,1], index: 1, kind: input, shape index: {}]
  %s2 = inlined_call_operand.vmem [shape: f32[16,32], index: 2, kind: input, shape index: {}]
  %s3 = inlined_call_operand.hbm [shape: f32[16,16], index: 3, kind: input, shape index: {}]
  %s4 = inlined_call_operand.hbm [shape: f32[1,1], index: 4, kind: output, shape index: {}]
  %s5 = sld [smem:[#allocation0]]
  $region65: #{tpu_custom_call.1} parent=0
    _
  %s7 = ssub.s32 1, %s5
  %s8 = scalar_select 0, %s7, %s5
  $region1: #{tpu_custom_call.1} parent=0
    #allocation3 [shape = 'u8[512]{0}', space=smem, size = 0x200, scoped, tag = 'input window, operand 0, single buffered']
    #allocation4 [shape = 's32[2]{0}', space=sflag, size = 0x8, scoped, tag = 'scoped memory for tpu_custom_call.1']
    #allocation5 [shape = 's32[2]{0}', space=sflag, size = 0x8, scoped, tag = 'scoped memory for tpu_custom_call.1']
    #allocation6 [shape = 's32[2]{0}', space=sflag, size = 0x8, scoped, tag = 'scoped memory for tpu_custom_call.1']
    #allocation7 [shape = 'u8[8192]{0}', space=vmem, size = 0x2000, scoped, tag = 'input window, operand 3']
    #allocation8 [shape = 'u8[512]{0}', space=smem, size = 0x200, scoped, tag = 'output window, operand 0, single buffered']
    %9 = vsyncpa [#allocation6], 0
    %10 = vsyncpa [#allocation4], 0
    %s11 = scalar_lea.sflag [#allocation4], 1
    %12 = vsyncpa %s11, 0
    %13 = vsyncpa [#allocation5], 0
    loop: start=0, step=1, limit=4
    $region2: #{tpu_custom_call.1} parent=1 // loop_pre_header
      _
    $region3: #{tpu_custom_call.1} parent=1 // loop_header
      %s15 = sphi 0, %s19
      %p16 = scmp.ge.s32.totalorder %s15, 4
      %s23 = sphi 0, %s23
      %s25 = sphi 0, %s23
      %s26 = sphi 0, %s25
      %s40 = sphi 0, %s26
      %s46 = sphi 0, %s48
      %s49 = sphi 0, %s46
      %s50 = sphi 0, %s49
      %s66 = sphi 0, %s50
      %s72 = sphi 0, %s74
      %s75 = sphi 0, %s72
      %s76 = sphi 0, %s75
      %s92 = sphi 0, %s76
      %s98 = sphi 0, %s100
      %s101 = sphi 0, %s98
      %s102 = sphi 0, %s101
      %s118 = sphi 0, %s102
      %s122 = sphi 0, %s122
      %s124 = sphi 0, %s122
      %s125 = sphi 0, %s124
      %s139 = sphi 0, %s125
    $region4: #{tpu_custom_call.1} parent=1 // loop_header_branch
      %18 = sbr.rel (%p16) target = $region8
    $region5: #{tpu_custom_call.1} parent=1 // loop_body
      %s20 = ssub.s32 %s15, 1
      %s21 = ssub.s32 %s15, 2
      %s22 = sadd.s32 %s15, 1
      %s24 = sadd.s32 %s23, 1
      %p27 = scmp.eq.s32.totalorder %s15, 1
      %p28 = scmp.ne.s32.totalorder %s23, %s25
      %p29 = scmp.eq.s32.totalorder %s15, 0
      %p30 = por %p28, %p29
      %p31 = scmp.ne.s32.totalorder %s23, %s25
      %p32 = scmp.eq.s32.totalorder %s20, 1
      %p33 = por %p31, %p32
      %p34 = scmp.ne.s32.totalorder %s25, %s26
      %p35 = scmp.eq.s32.totalorder %s20, 0
      %p36 = por %p34, %p35
      %p37 = scmp.ne.s32.totalorder %s25, %s26
      %p38 = scmp.eq.s32.totalorder %s21, 1
      %p39 = por %p37, %p38
      %p41 = scmp.ne.s32.totalorder %s26, %s40
      %p42 = scmp.eq.s32.totalorder %s21, 0
      %p43 = por %p41, %p42
      %s44 = ssub.s32 %s15, %s22
      %p45 = scmp.eq.s32.totalorder %s44, 0
      %s47 = sadd.s32 %s46, 1
      %s48 = scalar_select %p45, %s46, %s47
      %p51 = pneg %p45
      %p52 = scmp.eq.s32.totalorder %s15, 1
      %p53 = por %p51, %p52
      %p54 = scmp.ne.s32.totalorder %s46, %s49
      %p55 = scmp.eq.s32.totalorder %s15, 0
      %p56 = por %p54, %p55
      %p57 = scmp.ne.s32.totalorder %s46, %s49
      %p58 = scmp.eq.s32.totalorder %s20, 1
      %p59 = por %p57, %p58
      %p60 = scmp.ne.s32.totalorder %s49, %s50
      %p61 = scmp.eq.s32.totalorder %s20, 0
      %p62 = por %p60, %p61
      %p63 = scmp.ne.s32.totalorder %s49, %s50
      %p64 = scmp.eq.s32.totalorder %s21, 1
      %p65 = por %p63, %p64
      %p67 = scmp.ne.s32.totalorder %s50, %s66
      %p68 = scmp.eq.s32.totalorder %s21, 0
      %p69 = por %p67, %p68
      %s70 = ssub.s32 %s15, %s22
      %p71 = scmp.eq.s32.totalorder %s70, 0
      %s73 = sadd.s32 %s72, 1
      %s74 = scalar_select %p71, %s72, %s73
      %p77 = pneg %p71
      %p78 = scmp.eq.s32.totalorder %s15, 1
      %p79 = por %p77, %p78
      %p80 = scmp.ne.s32.totalorder %s72, %s75
      %p81 = scmp.eq.s32.totalorder %s15, 0
      %p82 = por %p80, %p81
      %p83 = scmp.ne.s32.totalorder %s72, %s75
      %p84 = scmp.eq.s32.totalorder %s20, 1
      %p85 = por %p83, %p84
      %p86 = scmp.ne.s32.totalorder %s75, %s76
      %p87 = scmp.eq.s32.totalorder %s20, 0
      %p88 = por %p86, %p87
      %p89 = scmp.ne.s32.totalorder %s75, %s76
      %p90 = scmp.eq.s32.totalorder %s21, 1
      %p91 = por %p89, %p90
      %p93 = scmp.ne.s32.totalorder %s76, %s92
      %p94 = scmp.eq.s32.totalorder %s21, 0
      %p95 = por %p93, %p94
      %s96 = ssub.s32 %s15, %s22
      %p97 = scmp.eq.s32.totalorder %s96, 0
      %s99 = sadd.s32 %s98, 1
      %s100 = scalar_select %p97, %s98, %s99
      %p103 = pneg %p97
      %p104 = scmp.eq.s32.totalorder %s15, 1
      %p105 = por %p103, %p104
      %p106 = scmp.ne.s32.totalorder %s98, %s101
      %p107 = scmp.eq.s32.totalorder %s15, 0
      %p108 = por %p106, %p107
      %p109 = scmp.ne.s32.totalorder %s98, %s101
      %p110 = scmp.eq.s32.totalorder %s20, 1
      %p111 = por %p109, %p110
      %p112 = scmp.ne.s32.totalorder %s101, %s102
      %p113 = scmp.eq.s32.totalorder %s20, 0
      %p114 = por %p112, %p113
      %p115 = scmp.ne.s32.totalorder %s101, %s102
      %p116 = scmp.eq.s32.totalorder %s21, 1
      %p117 = por %p115, %p116
      %p119 = scmp.ne.s32.totalorder %s102, %s118
      %p120 = scmp.eq.s32.totalorder %s21, 0
      %p121 = por %p119, %p120
      %s123 = sadd.s32 %s122, 1
      %p126 = scmp.eq.s32.totalorder %s15, 1
      %p127 = scmp.ne.s32.totalorder %s122, %s124
      %p128 = scmp.eq.s32.totalorder %s15, 0
      %p129 = por %p127, %p128
      %p130 = scmp.ne.s32.totalorder %s122, %s124
      %p131 = scmp.eq.s32.totalorder %s20, 1
      %p132 = por %p130, %p131
      %p133 = scmp.ne.s32.totalorder %s124, %s125
      %p134 = scmp.eq.s32.totalorder %s20, 0
      %p135 = por %p133, %p134
      %p136 = scmp.ne.s32.totalorder %s124, %s125
      %p137 = scmp.eq.s32.totalorder %s21, 1
      %p138 = por %p136, %p137
      %p140 = scmp.ne.s32.totalorder %s125, %s139
      %p141 = scmp.eq.s32.totalorder %s21, 0
      %p142 = por %p140, %p141
      %p143 = scmp.le.s32.totalorder 1, %s15
      %p144 = scmp.lt.s32.totalorder %s15, 3
      %p145 = pnand %p143, %p144
      %p146 = pneg %p145
      // Predicated region
      $region9: #{tpu_custom_call.1} parent=5 // pred_check
        _
      $region10: #{tpu_custom_call.1} parent=5 // pred_check_branch
        %148 = sbr.rel (%p145) target = $region12
      $region11: #{tpu_custom_call.1} parent=5 // pred_region
        %s149 = ssub.s32 %s15, 1
        // Predicated region
        $region13: #{tpu_custom_call.1} parent=11 // pred_check
          %p150 = pneg %p36
        $region14: #{tpu_custom_call.1} parent=11 // pred_check_branch
          %152 = sbr.rel (%p150) target = $region16
        $region15: #{tpu_custom_call.1} parent=11 // pred_region
          %s154 = ssub.s32 16, 16
          %155 = vsyncadd [#allocation6], %s154
          %s157 = sshll.u32 %s0, 4
          %s158 = int_to_ptr.vmem [resolvable:$true] %s157
          %160 = dma.vmem_to_smem %s158, 16, [#allocation3], [#allocation6]
        $region16: #{tpu_custom_call.1} parent=11 // pred_fallthru
          _
      $region12: #{tpu_custom_call.1} parent=5 // pred_fallthru
        _
      %p161 = scmp.lt.s32.totalorder %s15, 2
      // Predicated region
      $region17: #{tpu_custom_call.1} parent=5 // pred_check
        %p162 = pneg %p161
      $region18: #{tpu_custom_call.1} parent=5 // pred_check_branch
        %164 = sbr.rel (%p162) target = $region20
      $region19: #{tpu_custom_call.1} parent=5 // pred_region
        // Predicated region
        $region21: #{tpu_custom_call.1} parent=19 // pred_check
          %p165 = pneg %p56
        $region22: #{tpu_custom_call.1} parent=19 // pred_check_branch
          %167 = sbr.rel (%p165) target = $region24
        $region23: #{tpu_custom_call.1} parent=19 // pred_region
          %p168 = scmp.lt.s32.totalorder %s15, 1
          %s169 = scalar_select %p168, %s15, 1
          %s170 = smul.addr %s169, 8
          %s171 = scalar_lea.vmem %s1, %s170
        $region24: #{tpu_custom_call.1} parent=19 // pred_fallthru
          _
        // Predicated region
        $region25: #{tpu_custom_call.1} parent=19 // pred_check
          %p172 = pneg %p82
        $region26: #{tpu_custom_call.1} parent=19 // pred_check_branch
          %174 = sbr.rel (%p172) target = $region28
        $region27: #{tpu_custom_call.1} parent=19 // pred_region
          %p175 = scmp.lt.s32.totalorder %s15, 1
          %s176 = scalar_select %p175, %s15, 1
          %s177 = smul.addr %s176, 8
          %s178 = scalar_lea.vmem %s2, %s177
        $region28: #{tpu_custom_call.1} parent=19 // pred_fallthru
          _
        // Predicated region
        $region29: #{tpu_custom_call.1} parent=19 // pred_check
          %p179 = pneg %p108
        $region30: #{tpu_custom_call.1} parent=19 // pred_check_branch
          %181 = sbr.rel (%p179) target = $region32
        $region31: #{tpu_custom_call.1} parent=19 // pred_region
          %s182 = sand.u32 %s98, 1
          %s183 = scalar_lea.sflag [#allocation4], %s182
          %s184 = sand.u32 %s98, 1
          %s185 = smul.addr %s184, 8
          %s186 = scalar_lea.vmem [#allocation7], %s185
          %s188 = ssub.s32 128, 128
          %189 = vsyncadd %s183, %s188
          %s190 = smul.addr %s15, 128
          %s191 = scalar_lea.hbm %s3, %s190
          %s193 = sshll.u32 %s186, 4
          %s194 = int_to_ptr.vmem [resolvable:$true] %s193
          %196 = dma.hbm_to_vmem [thread:$0]  %s191, 128, %s194, %s183
        $region32: #{tpu_custom_call.1} parent=19 // pred_fallthru
          _
      $region20: #{tpu_custom_call.1} parent=5 // pred_fallthru
        _
      %p197 = scmp.le.s32.totalorder 1, %s15
      %p198 = scmp.lt.s32.totalorder %s15, 3
      %p199 = pnand %p197, %p198
      %p200 = pneg %p199
      // Predicated region
      $region33: #{tpu_custom_call.1} parent=5 // pred_check
        _
      $region34: #{tpu_custom_call.1} parent=5 // pred_check_branch
        %202 = sbr.rel (%p199) target = $region36
      $region35: #{tpu_custom_call.1} parent=5 // pred_region
        %s203 = ssub.s32 %s15, 1
        // Predicated region
        $region37: #{tpu_custom_call.1} parent=35 // pred_check
          %p204 = pneg %p36
        $region38: #{tpu_custom_call.1} parent=35 // pred_check_branch
          %206 = sbr.rel (%p204) target = $region40
        $region39: #{tpu_custom_call.1} parent=35 // pred_region
          %207 = dma.done [#allocation6], 16
        $region40: #{tpu_custom_call.1} parent=35 // pred_fallthru
          _
        %s208 = sand.u32 %s101, 1
        %s209 = scalar_lea.sflag [#allocation4], %s208
        %s210 = sand.u32 %s101, 1
        %s211 = smul.addr %s210, 8
        %s212 = scalar_lea.vmem [#allocation7], %s211
        // Predicated region
        $region41: #{tpu_custom_call.1} parent=35 // pred_check
          %p213 = pneg %p114
        $region42: #{tpu_custom_call.1} parent=35 // pred_check_branch
          %215 = sbr.rel (%p213) target = $region44
        $region43: #{tpu_custom_call.1} parent=35 // pred_region
          %216 = dma.done %s209, 128
        $region44: #{tpu_custom_call.1} parent=35 // pred_fallthru
          _
        %217 = sfence
        %p218 = pneg %p36
        %p219 = pneg %p33
        %p220 = scmp.lt.s32.totalorder %s20, 1
        %s221 = scalar_select %p220, %s20, 1
        %s222 = smul.addr %s221, 8
        %s223 = scalar_lea.vmem %s1, %s222
        %p224 = pneg %p62
        %p225 = pneg %p59
        %p226 = scmp.lt.s32.totalorder %s20, 1
        %s227 = scalar_select %p226, %s20, 1
        %s228 = smul.addr %s227, 8
        %s229 = scalar_lea.vmem %s2, %s228
        %p230 = pneg %p88
        %p231 = pneg %p85
        %s232 = sand.u32 %s101, 1
        %s233 = scalar_lea.sflag [#allocation4], %s232
        %s234 = sand.u32 %s101, 1
        %s235 = smul.addr %s234, 8
        %s236 = scalar_lea.vmem [#allocation7], %s235
        %p237 = pneg %p114
        %p238 = pneg %p111
        %p239 = pneg %p135
        %p240 = pneg %p132
        %p241 = scmp.lt.s32.totalorder %s20, 1
        %s242 = scalar_select %p241, %s20, 1
        %s243 = smul.addr %s242, 8
        %s244 = scalar_lea.vmem %s1, %s243
        %p245 = scmp.lt.s32.totalorder %s20, 1
        %s246 = scalar_select %p245, %s20, 1
        %s247 = smul.addr %s246, 8
        %s248 = scalar_lea.vmem %s2, %s247
        %p249 = scmp.eq.s32.totalorder %s20, 0
        // Predicated region
        $region45: #{tpu_custom_call.1} parent=35 // pred_check
          %p250 = pneg %p249
        $region46: #{tpu_custom_call.1} parent=35 // pred_check_branch
          %252 = sbr.rel (%p250) target = $region48
        $region47: #{tpu_custom_call.1} parent=35 // pred_region
          %s253 = scalar_lea.smem [#allocation2], 0
          %254 = sst [smem:[%s253]] 0.0
          %s255 = scalar_lea.smem [#allocation2], 1
          %256 = sst [smem:[%s255]] 0.0
        $region48: #{tpu_custom_call.1} parent=35 // pred_fallthru
          _
        %v257 = vld [vmem:[%s248] sm:$0xff]
        %v258 = vld [vmem:[%s212] sm:$0xff]
        %v259 = vld [vmem:[%s244] sm:$0xff]
        %s260 = sld [smem:[#allocation3]]
        %vm261 = vcmask 261120
        %v262 = vsel %vm261, %v257, -inf
        %263 = vmax.xlane.f32.xlu0 %v262
        %v264 = vpop.xlane.xlu0 %263
        %v265 = vsub.f32 %v257, %v264
        %v266 = vmul.f32 %v265, 1.442695
        %v267 = vpow.pop %v266
        %v268 = vsel %vm261, %v267, 0.0
        %269 = vadd.xlane.f32.xlu0 %v268
        %v270 = vpop.xlane.xlu0 %269
        %v271 = vlog2.pop %v270
        %v272 = vmul.f32 %v271, 0.6931472
        %v273 = vadd.f32 %v272, %v264
        %v274 = vlaneseq
        %v275 = vand.u32 %v274, 127
        %276 = vset.pattern.permute.xlu0 0
        %277 = vperm.xlu0 %276, %v259
        %v278 = vpop.permute.xlu0 %277
        %vm279 = vcmp.eq.s32.totalorder %v275, %v278
        %v280 = vsel %vm279, %v257, 0.0
        %v281 = vsel %vm261, %v280, 0.0
        %282 = vadd.xlane.f32.xlu0 %v281
        %v283 = vpop.xlane.xlu0 %282
        %s284 = sld [smem:[#allocation2]]
        %v285 = vsub.f32 %v273, %v283
        %vm286 = vcmask 7168
        %v287 = vsel %vm286, %v285, 0.0
        %288 = vadd.xlane.f32.xlu0 %v287
        %v289 = vpop.xlane.xlu0 %288
        %v290 = vrot.slane %v289, 4
        %v291 = vadd.f32 %v289, %v290
        %v292 = vrot.slane %v291, 2
        %v293 = vadd.f32 %v291, %v292
        %v294 = vrot.slane %v293, 1
        %v295 = vadd.f32 %v293, %v294
        %s296 = vtos %v295
        %s297 = sadd.f32 %s284, %s296
        %s298 = scalar_lea.smem [#allocation2], 0
        %299 = sst [smem:[%s298]] %s297
        %vm300 = vcmask 130048
        %v301 = vsel %vm300, %v258, 0.0
        %302 = vadd.xlane.f32.xlu0 %v301
        %v303 = vpop.xlane.xlu0 %302
        %v304 = vmul.f32 %v303, 0.0625
        %v305 = vstv %s260
        %v306 = vsub.f32 %v304, %v305
        %s307 = sld [smem:[#allocation2 + $0x1]]
        %v308 = vmul.f32 %v306, %v306
        %v309 = vsel %vm286, %v308, 0.0
        %310 = vadd.xlane.f32.xlu0 %v309
        %v311 = vpop.xlane.xlu0 %310
        %v312 = vrot.slane %v311, 4
        %v313 = vadd.f32 %v311, %v312
        %v314 = vrot.slane %v313, 2
        %v315 = vadd.f32 %v313, %v314
        %v316 = vrot.slane %v315, 1
        %v317 = vadd.f32 %v315, %v316
        %s318 = vtos %v317
        %s319 = sadd.f32 %s307, %s318
        %s320 = scalar_lea.smem [#allocation2], 1
        %321 = sst [smem:[%s320]] %s319
        %p322 = scmp.eq.s32.totalorder %s20, 1
        // Predicated region
        $region49: #{tpu_custom_call.1} parent=35 // pred_check
          %p323 = pneg %p322
        $region50: #{tpu_custom_call.1} parent=35 // pred_check_branch
          %325 = sbr.rel (%p323) target = $region52
        $region51: #{tpu_custom_call.1} parent=35 // pred_region
          %s326 = sld [smem:[#allocation3 + $0x2]]
          %s327 = sld [smem:[#allocation2]]
          %s328 = smul.f32 %s327, %s326
          %s329 = sld [smem:[#allocation2 + $0x1]]
          %s330 = smul.f32 %s329, %s326
          %s331 = smul.f32 %s330, 0.022
          %s332 = sadd.f32 %s328, %s331
          %s333 = sld [smem:[#allocation3]]
          %s334 = smul.f32 %s333, 0.01
          %s335 = sadd.f32 %s332, %s334
          %s336 = sld [smem:[#allocation3 + $0x1]]
          %s337 = smul.f32 %s336, 2.0
          %s338 = sadd.f32 %s335, %s337
          %s339 = scalar_lea.smem [#allocation8], 0
          %340 = sst [smem:[%s339]] %s338
        $region52: #{tpu_custom_call.1} parent=35 // pred_fallthru
          _
        // Predicated region
        $region53: #{tpu_custom_call.1} parent=35 // pred_check
          %p341 = pneg %p132
        $region54: #{tpu_custom_call.1} parent=35 // pred_check_branch
          %343 = sbr.rel (%p341) target = $region56
        $region55: #{tpu_custom_call.1} parent=35 // pred_region
          %s345 = ssub.s32 16, 16
          %346 = vsyncadd [#allocation5], %s345
          %349 = dma.smem_to_hbm [#allocation8], 16, %s4, [#allocation5]
        $region56: #{tpu_custom_call.1} parent=35 // pred_fallthru
          _
        // Predicated region
        $region57: #{tpu_custom_call.1} parent=35 // pred_check
          %p350 = pneg %p132
        $region58: #{tpu_custom_call.1} parent=35 // pred_check_branch
          %352 = sbr.rel (%p350) target = $region60
        $region59: #{tpu_custom_call.1} parent=35 // pred_region
          %353 = dma.done [#allocation5], 16
        $region60: #{tpu_custom_call.1} parent=35 // pred_fallthru
          _
        %354 = sfence
      $region36: #{tpu_custom_call.1} parent=5 // pred_fallthru
        _
      %p355 = scmp.le.s32.totalorder 2, %s15
      // Predicated region
      $region61: #{tpu_custom_call.1} parent=5 // pred_check
        %p356 = pneg %p355
      $region62: #{tpu_custom_call.1} parent=5 // pred_check_branch
        %358 = sbr.rel (%p356) target = $region64
      $region63: #{tpu_custom_call.1} parent=5 // pred_region
        %s359 = ssub.s32 %s15, 2
      $region64: #{tpu_custom_call.1} parent=5 // pred_fallthru
        _
    $region6: #{tpu_custom_call.1} parent=1 // loop_footer
      %s19 = sadd.s32 1, %s15
    $region7: #{tpu_custom_call.1} parent=1 // loop_footer_branch
      %14 = sbr.rel target = $region3
    $region8: #{tpu_custom_call.1} parent=1 // loop_exit
      _
    %360 = vsyncpa [#allocation4], 1
    %s361 = scalar_lea.sflag [#allocation4], 1
    %362 = vsyncpa %s361, 1
    %363 = vsyncpa [#allocation5], 1
    %s364 = scalar_lea.sflag [#allocation5], 1
    %365 = vsyncpa %s364, 1
    %366 = vsyncpa [#allocation6], 1
    %s367 = scalar_lea.sflag [#allocation6], 1
    %368 = vsyncpa %s367, 1

</llo_original>
